<compile_context>
chip_gen: v7x
topology: tpu7x:2x2x1
jax: 0.10.0
libtpu: 0.0.40
codegen_flags: <defaults>
</compile_context>

<pallas_src>
import math

import jax
import jax.numpy as jnp
from jax import lax
from jax.experimental import pallas as pl
from jax.experimental.pallas import tpu as pltpu

block_size = 256          # max sequence length (causal-mask horizon)
dropout_p = 0.2           # nn.Dropout(0.2) — identity in eval mode (see TODO above)
n_embd = 384

_DEFAULT_VMEM_BUDGET = 32 * 1024 * 1024   # scoped-VMEM-safe on v5e/v6e/v7x


def _head_kernel(x_ref, wqkv_ref, o_ref):
    # x_ref:    (Bb, T, C)          f32 (or bf16) tile covering Bb batch elements
    # wqkv_ref: (C, 3*head_size)    bf16 [Wq*C^-0.5 | Wk | Wv] (already transposed)
    # o_ref:    (Bb, T, head_size)  f32 (or bf16) output tile
    x = x_ref[...].astype(jnp.bfloat16)       # in-kernel cast: free under DMA/MXU slack
    wqkv = wqkv_ref[...]
    Bb, T, C = x.shape
    hs = wqkv.shape[1] // 3

    # Fused q/k/v projection: one (Bb*T, C) @ (C, 3*hs) matmul, f32 accumulation.
    # The 1/sqrt(C) softmax scale is pre-folded into the q columns of wqkv.
    qkv = jnp.dot(x.reshape(Bb * T, C), wqkv,
                  preferred_element_type=jnp.float32)            # (Bb*T, 3*hs) f32
    qkv = qkv.reshape(Bb, T, 3 * hs)
    # Note: the middle 64-wide slice is lane-misaligned (lanes 64:128) and may cost
    # an XLU rotate; minor today, becomes moot with multi-head fusion.
    q = qkv[:, :, :hs].astype(jnp.bfloat16)
    k = qkv[:, :, hs:2 * hs].astype(jnp.bfloat16)
    v = qkv[:, :, 2 * hs:].astype(jnp.bfloat16)

    # Scaled scores: batched q @ k^T without materializing a transpose.
    wei = lax.dot_general(
        q, k,
        dimension_numbers=(((2,), (2,)), ((0,), (0,))),
        preferred_element_type=jnp.float32)                      # (Bb, T, T) f32

    # Causal mask built from two thin iotas (cheap vs two full (T,T) iotas).
    row = lax.broadcasted_iota(jnp.int32, (T, 1), 0)
    col = lax.broadcasted_iota(jnp.int32, (1, T), 1)
    causal = (col <= row)[None, :, :]                            # (1, T, T) bool
    wei = jnp.where(causal, wei, jnp.float32(-jnp.inf))

    # Softmax statistics in f32; normalization deferred past the PV matmul.
    m = jnp.max(wei, axis=-1, keepdims=True)
    e = jnp.exp(wei - m)                                         # (Bb, T, T) f32, <= 1
    s = jnp.sum(e, axis=-1, keepdims=True)                       # (Bb, T, 1)  f32

    # Un-normalized PV matmul (bf16 MXU inputs, f32 accumulation), then normalize
    # the hs-wide result instead of the T-wide probability matrix.
    out = lax.dot_general(
        e.astype(jnp.bfloat16), v,
        dimension_numbers=(((2,), (1,)), ((0,), (0,))),
        preferred_element_type=jnp.float32)                      # (Bb, T, hs) f32
    out = out * pl.reciprocal(s, approx=True)                    # EUP slot, ~free
    o_ref[...] = out.astype(o_ref.dtype)


def _step_vmem_bytes(Bb, T, C, hs, x_itemsize, out_itemsize):
    """Generous upper bound on live VMEM for one grid step."""
    io = 2 * Bb * T * C * x_itemsize          # x block, double-buffered
    io += 2 * C * 3 * hs * 2                  # fused bf16 weight, double-buffered
    io += 2 * Bb * T * hs * out_itemsize      # output block, double-buffered
    # intermediates: qkv f32 + bf16 q/k/v + up to three (T,T) f32 buffers + PV acc
    inter = Bb * T * (3 * hs * 4 + 3 * hs * 2 + 3 * T * 4 + 2 * hs * 4)
    return io + inter


def _pick_batch_block(B, T, C, hs, x_itemsize, out_itemsize,
                      budget=_DEFAULT_VMEM_BUDGET, max_bb=16):
    """Largest divisor of B that fits the VMEM budget, keeping >= 2 grid steps
    (when B >= 2) so both v7x TensorCores get work."""
    for bb in range(min(max_bb, B), 0, -1):
        if B % bb:
            continue
        if B >= 2 and B // bb < 2:
            continue
        if _step_vmem_bytes(bb, T, C, hs, x_itemsize, out_itemsize) > budget:
            continue
        return bb
    return 1


def head_forward(x, w_key, w_query, w_value, *, batch_block=None,
                 out_dtype=jnp.float32, vmem_budget_bytes=_DEFAULT_VMEM_BUDGET):
    """x: (B, T, C) float32 or bfloat16; w_*: (head_size, n_embd) PyTorch Linear weights.

    out_dtype=jnp.bfloat16 halves output writeback on mem-bound v6e/v7x when the
    consumer accepts bf16. vmem_budget_bytes can be raised to ~48-64 MiB on
    v5e/v6e (128 MiB physical VMEM) to unlock larger batch blocks.
    """
    B, T, C = x.shape
    head_size = w_key.shape[0]
    assert C == n_embd and T <= block_size

    # Fold 1/sqrt(C) into the query weights, concat [Wq*s | Wk | Wv] -> (C, 3*hs) bf16.
    scale = jnp.float32(C) ** jnp.float32(-0.5)
    w_qkv = jnp.concatenate(
        [w_query.T * scale, w_key.T, w_value.T], axis=1).astype(jnp.bfloat16)

    x_itemsize = jnp.dtype(x.dtype).itemsize
    out_itemsize = jnp.dtype(out_dtype).itemsize
    Bb = (_pick_batch_block(B, T, C, head_size, x_itemsize, out_itemsize,
                            budget=vmem_budget_bytes)
          if batch_block is None else batch_block)
    assert B % Bb == 0, "batch block must divide B"
    grid = (B // Bb,)

    grid_spec = pltpu.PrefetchScalarGridSpec(
        num_scalar_prefetch=0,
        grid=grid,
        in_specs=[
            pl.BlockSpec((Bb, T, C), lambda b: (b, 0, 0)),            # x, Bb batches/step
            pl.BlockSpec((C, 3 * head_size), lambda b: (0, 0)),       # fused QKV weight
        ],
        out_specs=pl.BlockSpec((Bb, T, head_size), lambda b: (b, 0, 0)),
    )

    return pl.pallas_call(
        _head_kernel,
        out_shape=jax.ShapeDtypeStruct((B, T, head_size), out_dtype),
        grid_spec=grid_spec,
        compiler_params=pltpu.CompilerParams(
            dimension_semantics=("parallel",),
            # The block picker keeps the per-step footprint under this budget;
            # 32 MiB is scoped-VMEM-safe on v7x's 64 MiB physical VMEM.
            vmem_limit_bytes=int(vmem_budget_bytes),
        ),
    )(x, w_qkv)


def _reference(x, w_key, w_query, w_value):
    """Pure-JAX f32 reference mirroring the PyTorch forward (eval mode)."""
    B, T, C = x.shape
    k = x @ w_key.T
    q = x @ w_query.T
    v = x @ w_value.T
    wei = (q @ jnp.swapaxes(k, -2, -1)) * (C ** -0.5)
    tril = jnp.tril(jnp.ones((T, T), dtype=bool))
    wei = jnp.where(tril, wei, -jnp.inf)
    wei = jax.nn.softmax(wei, axis=-1)
    return wei @ v


if __name__ == "__main__":
    key = jax.random.PRNGKey(0)
    B, T, C = 2, 8, n_embd
    head_size = 64

    k_x, k_k, k_q, k_v = jax.random.split(key, 4)
    x = jax.random.normal(k_x, (B, T, C), dtype=jnp.float32)

    # deterministic "Linear(n_embd, head_size, bias=False)" weights, PyTorch shape (out, in)
    bound = 1.0 / math.sqrt(n_embd)
    w_key_ = jax.random.uniform(k_k, (head_size, n_embd), jnp.float32, -bound, bound)
    w_query_ = jax.random.uniform(k_q, (head_size, n_embd), jnp.float32, -bound, bound)
    w_value_ = jax.random.uniform(k_v, (head_size, n_embd), jnp.float32, -bound, bound)

    out = head_forward(x, w_key_, w_query_, w_value_)
    out = jax.block_until_ready(out)

    ref = _reference(x, w_key_, w_query_, w_value_)
    assert out.shape == (B, T, head_size)
    # bf16 MXU inputs (f32 accumulation) + approx reciprocal vs pure-f32 reference.
    assert jnp.allclose(out, ref, atol=3e-2, rtol=3e-2), "mismatch vs reference"

    print("KERNEL_OK")
</pallas_src>

<mosaic_0001>
module attributes {stable_mosaic.version = 11 : i64} {
  func.func @_head_kernel(%arg0: i32, %arg1: memref<1x8x384xf32, #tpu.memory_space<vmem>>, %arg2: memref<384x192xbf16, #tpu.memory_space<vmem>>, %arg3: memref<1x8x64xf32, #tpu.memory_space<vmem>>) attributes {dimension_semantics = [#tpu.dimension_semantics<parallel>], iteration_bounds = array<i64: 2>, scalar_prefetch = 0 : i64, scratch_operands = 0 : i64, tpu.core_type = #tpu.core_type<tc>, window_params = [{transform_indices = @transform_0, window_bounds = array<i64: 1, 8, 384>}, {pipeline_mode = #tpu.pipeline_mode<synchronous>, transform_indices = @transform_1, window_bounds = array<i64: 384, 192>}, {transform_indices = @transform_2, window_bounds = array<i64: 1, 8, 64>}]} {
    %c0 = arith.constant 0 : index
    %c0_0 = arith.constant 0 : index
    %c0_1 = arith.constant 0 : index
    %0 = vector.load %arg1[%c0, %c0_0, %c0_1] : memref<1x8x384xf32, #tpu.memory_space<vmem>>, vector<1x8x384xf32>
    %1 = arith.truncf %0 : vector<1x8x384xf32> to vector<1x8x384xbf16>
    %c0_2 = arith.constant 0 : index
    %c0_3 = arith.constant 0 : index
    %2 = vector.load %arg2[%c0_2, %c0_3] : memref<384x192xbf16, #tpu.memory_space<vmem>>, vector<384x192xbf16>
    %3 = vector.shape_cast %1 : vector<1x8x384xbf16> to vector<8x384xbf16>
    %cst = arith.constant dense<0.000000e+00> : vector<8x192xf32>
    %4 = tpu.matmul %3, %2, %cst {dimension_numbers = #tpu.dot_dimension_numbers<[1], [0], [0], [1], [0, 0, 1, 1], [], []>} : vector<8x384xbf16>, vector<384x192xbf16>, vector<8x192xf32> -> vector<8x192xf32>
    %5 = vector.shape_cast %4 : vector<8x192xf32> to vector<1x8x192xf32>
    %6 = vector.extract_strided_slice %5 {offsets = [0, 0, 0], sizes = [1, 8, 64], strides = [1, 1, 1]} : vector<1x8x192xf32> to vector<1x8x64xf32>
    %7 = arith.truncf %6 : vector<1x8x64xf32> to vector<1x8x64xbf16>
    %8 = vector.extract_strided_slice %5 {offsets = [0, 0, 64], sizes = [1, 8, 64], strides = [1, 1, 1]} : vector<1x8x192xf32> to vector<1x8x64xf32>
    %9 = arith.truncf %8 : vector<1x8x64xf32> to vector<1x8x64xbf16>
    %10 = vector.extract_strided_slice %5 {offsets = [0, 0, 128], sizes = [1, 8, 64], strides = [1, 1, 1]} : vector<1x8x192xf32> to vector<1x8x64xf32>
    %11 = arith.truncf %10 : vector<1x8x64xf32> to vector<1x8x64xbf16>
    %cst_4 = arith.constant dense<0.000000e+00> : vector<1x8x8xf32>
    %12 = tpu.matmul %7, %9, %cst_4 {dimension_numbers = #tpu.dot_dimension_numbers<[2], [2], [1], [1], [0, 0, 0, 1, 1, 1], [0], [0]>} : vector<1x8x64xbf16>, vector<1x8x64xbf16>, vector<1x8x8xf32> -> vector<1x8x8xf32>
    %13 = tpu.iota {dimensions = array<i32: 0>} : vector<8x1xi32>
    %14 = tpu.iota {dimensions = array<i32: 1>} : vector<1x8xi32>
    %15 = vector.broadcast %14 : vector<1x8xi32> to vector<8x8xi32>
    %16 = vector.broadcast %13 : vector<8x1xi32> to vector<8x8xi32>
    %17 = arith.cmpi sle, %15, %16 : vector<8x8xi32>
    %18 = vector.shape_cast %17 : vector<8x8xi1> to vector<1x8x8xi1>
    %cst_5 = arith.constant 0xFF800000 : f32
    %19 = vector.broadcast %cst_5 : f32 to vector<1x8x8xf32>
    %20 = arith.select %18, %12, %19 : vector<1x8x8xi1>, vector<1x8x8xf32>
    %cst_6 = arith.constant dense<0xFF800000> : vector<1x8xf32>
    %21 = vector.multi_reduction <maximumf>, %20, %cst_6 [2] : vector<1x8x8xf32> to vector<1x8xf32>
    %22 = vector.shape_cast %21 : vector<1x8xf32> to vector<1x8x1xf32>
    %23 = vector.broadcast %22 : vector<1x8x1xf32> to vector<1x8x8xf32>
    %24 = arith.subf %20, %23 : vector<1x8x8xf32>
    %25 = math.exp %24 : vector<1x8x8xf32>
    %cst_7 = arith.constant dense<0.000000e+00> : vector<1x8xf32>
    %26 = vector.multi_reduction <add>, %25, %cst_7 [2] : vector<1x8x8xf32> to vector<1x8xf32>
    %27 = vector.shape_cast %26 : vector<1x8xf32> to vector<1x8x1xf32>
    %28 = arith.truncf %25 : vector<1x8x8xf32> to vector<1x8x8xbf16>
    %cst_8 = arith.constant dense<0.000000e+00> : vector<1x8x64xf32>
    %29 = tpu.matmul %28, %11, %cst_8 {dimension_numbers = #tpu.dot_dimension_numbers<[2], [1], [1], [2], [0, 0, 0, 1, 1, 2], [0], [0]>} : vector<1x8x8xbf16>, vector<1x8x64xbf16>, vector<1x8x64xf32> -> vector<1x8x64xf32>
    %30 = tpu.reciprocal %27 {approx = true} : vector<1x8x1xf32> -> vector<1x8x1xf32>
    %31 = vector.broadcast %30 : vector<1x8x1xf32> to vector<1x8x64xf32>
    %32 = arith.mulf %29, %31 : vector<1x8x64xf32>
    %c0_9 = arith.constant 0 : index
    %c0_10 = arith.constant 0 : index
    %c0_11 = arith.constant 0 : index
    %33 = vector.load %arg3[%c0_9, %c0_10, %c0_11] : memref<1x8x64xf32, #tpu.memory_space<vmem>>, vector<1x8x64xf32>
    tpu.vector_store %arg3[%c0_9, %c0_10, %c0_11], %32 {strides = array<i32>} : memref<1x8x64xf32, #tpu.memory_space<vmem>>, vector<1x8x64xf32>,
    return
  }
  func.func @transform_0(%arg0: i32) -> (i32, i32, i32) {
    %c0_i32 = arith.constant 0 : i32
    %c0_i32_0 = arith.constant 0 : i32
    %c0_i32_1 = arith.constant 0 : i32
    return %arg0, %c0_i32, %c0_i32_0 : i32, i32, i32
  }
  func.func @transform_1(%arg0: i32) -> (i32, i32) {
    %c0_i32 = arith.constant 0 : i32
    %c0_i32_0 = arith.constant 0 : i32
    %c0_i32_1 = arith.constant 0 : i32
    return %c0_i32, %c0_i32_0 : i32, i32
  }
  func.func @transform_2(%arg0: i32) -> (i32, i32, i32) {
    %c0_i32 = arith.constant 0 : i32
    %c0_i32_0 = arith.constant 0 : i32
    %c0_i32_1 = arith.constant 0 : i32
    return %arg0, %c0_i32, %c0_i32_0 : i32, i32, i32
  }
}

</mosaic_0001>

<llo_original>
// kernel: tpu_custom_call.1
$region0: #{tpu_custom_call.1}
  #allocation0 [shape = 'u32[]', space=smem, size = 0x4, offset = 0x4, fixed_abs, tag = 'smem constant byte address 0x4 - core index']
  #allocation1 [shape = 'u32[144,128]{1,0:T(1,128)}', space=vmem, size = 0x12000, scoped, tag = 'internal scratch']
  %s0 = inlined_call_operand.vmem [shape: f32[2,8,384], index: 0, kind: input, shape index: {}]
  %s1 = inlined_call_operand.vmem [shape: bf16[384,192], index: 1, kind: input, shape index: {}]
  %s2 = inlined_call_operand.hbm [shape: f32[2,8,64], index: 2, kind: output, shape index: {}]
  %s3 = sld [smem:[#allocation0]]
  $region41: #{tpu_custom_call.1} parent=0
    _
  %s5 = ssub.s32 1, %s3
  %s6 = scalar_select 0, %s5, %s3
  $region1: #{tpu_custom_call.1} parent=0
    #allocation2 [shape = 'u8[8192]{0}', space=vmem, size = 0x2000, scoped, tag = 'output window, operand 0']
    #allocation3 [shape = 's32[2]{0}', space=sflag, size = 0x8, scoped, tag = 'scoped memory for tpu_custom_call.1']
    %7 = vsyncpa [#allocation3], 0
    %s8 = scalar_lea.sflag [#allocation3], 1
    %9 = vsyncpa %s8, 0
    loop: start=0, step=1, limit=4
    $region2: #{tpu_custom_call.1} parent=1 // loop_pre_header
      _
    $region3: #{tpu_custom_call.1} parent=1 // loop_header
      %s11 = sphi 0, %s15
      %p12 = scmp.ge.s32.totalorder %s11, 4
      %s21 = sphi 0, %s23
      %s24 = sphi 0, %s21
      %s25 = sphi 0, %s24
      %s41 = sphi 0, %s25
      %s45 = sphi 0, %s45
      %s47 = sphi 0, %s45
      %s48 = sphi 0, %s47
      %s62 = sphi 0, %s48
      %s68 = sphi 0, %s70
      %s71 = sphi 0, %s68
      %s72 = sphi 0, %s71
      %s88 = sphi 0, %s72
    $region4: #{tpu_custom_call.1} parent=1 // loop_header_branch
      %14 = sbr.rel (%p12) target = $region8
    $region5: #{tpu_custom_call.1} parent=1 // loop_body
      %s16 = ssub.s32 %s11, 1
      %s17 = ssub.s32 %s11, 2
      %s18 = sadd.s32 %s11, 1
      %s19 = ssub.s32 %s11, %s18
      %p20 = scmp.eq.s32.totalorder %s19, 0
      %s22 = sadd.s32 %s21, 1
      %s23 = scalar_select %p20, %s21, %s22
      %p26 = pneg %p20
      %p27 = scmp.eq.s32.totalorder %s11, 1
      %p28 = por %p26, %p27
      %p29 = scmp.ne.s32.totalorder %s21, %s24
      %p30 = scmp.eq.s32.totalorder %s11, 0
      %p31 = por %p29, %p30
      %p32 = scmp.ne.s32.totalorder %s21, %s24
      %p33 = scmp.eq.s32.totalorder %s16, 1
      %p34 = por %p32, %p33
      %p35 = scmp.ne.s32.totalorder %s24, %s25
      %p36 = scmp.eq.s32.totalorder %s16, 0
      %p37 = por %p35, %p36
      %p38 = scmp.ne.s32.totalorder %s24, %s25
      %p39 = scmp.eq.s32.totalorder %s17, 1
      %p40 = por %p38, %p39
      %p42 = scmp.ne.s32.totalorder %s25, %s41
      %p43 = scmp.eq.s32.totalorder %s17, 0
      %p44 = por %p42, %p43
      %s46 = sadd.s32 %s45, 1
      %p49 = scmp.eq.s32.totalorder %s11, 1
      %p50 = scmp.ne.s32.totalorder %s45, %s47
      %p51 = scmp.eq.s32.totalorder %s11, 0
      %p52 = por %p50, %p51
      %p53 = scmp.ne.s32.totalorder %s45, %s47
      %p54 = scmp.eq.s32.totalorder %s16, 1
      %p55 = por %p53, %p54
      %p56 = scmp.ne.s32.totalorder %s47, %s48
      %p57 = scmp.eq.s32.totalorder %s16, 0
      %p58 = por %p56, %p57
      %p59 = scmp.ne.s32.totalorder %s47, %s48
      %p60 = scmp.eq.s32.totalorder %s17, 1
      %p61 = por %p59, %p60
      %p63 = scmp.ne.s32.totalorder %s48, %s62
      %p64 = scmp.eq.s32.totalorder %s17, 0
      %p65 = por %p63, %p64
      %s66 = ssub.s32 %s11, %s18
      %p67 = scmp.eq.s32.totalorder %s66, 0
      %s69 = sadd.s32 %s68, 1
      %s70 = scalar_select %p67, %s68, %s69
      %p73 = pneg %p67
      %p74 = scmp.eq.s32.totalorder %s11, 1
      %p75 = por %p73, %p74
      %p76 = scmp.ne.s32.totalorder %s68, %s71
      %p77 = scmp.eq.s32.totalorder %s11, 0
      %p78 = por %p76, %p77
      %p79 = scmp.ne.s32.totalorder %s68, %s71
      %p80 = scmp.eq.s32.totalorder %s16, 1
      %p81 = por %p79, %p80
      %p82 = scmp.ne.s32.totalorder %s71, %s72
      %p83 = scmp.eq.s32.totalorder %s16, 0
      %p84 = por %p82, %p83
      %p85 = scmp.ne.s32.totalorder %s71, %s72
      %p86 = scmp.eq.s32.totalorder %s17, 1
      %p87 = por %p85, %p86
      %p89 = scmp.ne.s32.totalorder %s72, %s88
      %p90 = scmp.eq.s32.totalorder %s17, 0
      %p91 = por %p89, %p90
      %p92 = scmp.le.s32.totalorder 1, %s11
      %p93 = scmp.lt.s32.totalorder %s11, 3
      %p94 = pnand %p92, %p93
      %p95 = pneg %p94
      // Predicated region
      $region9: #{tpu_custom_call.1} parent=5 // pred_check
        _
      $region10: #{tpu_custom_call.1} parent=5 // pred_check_branch
        %97 = sbr.rel (%p94) target = $region12
      $region11: #{tpu_custom_call.1} parent=5 // pred_region
        %s98 = ssub.s32 %s11, 1
        // Predicated region
        $region13: #{tpu_custom_call.1} parent=11 // pred_check
          %p99 = pneg %p58
        $region14: #{tpu_custom_call.1} parent=11 // pred_check_branch
          %101 = sbr.rel (%p99) target = $region16
        $region15: #{tpu_custom_call.1} parent=11 // pred_region
          _
        $region16: #{tpu_custom_call.1} parent=11 // pred_fallthru
          _
      $region12: #{tpu_custom_call.1} parent=5 // pred_fallthru
        _
      %p102 = scmp.lt.s32.totalorder %s11, 2
      // Predicated region
      $region17: #{tpu_custom_call.1} parent=5 // pred_check
        %p103 = pneg %p102
      $region18: #{tpu_custom_call.1} parent=5 // pred_check_branch
        %105 = sbr.rel (%p103) target = $region20
      $region19: #{tpu_custom_call.1} parent=5 // pred_region
        // Predicated region
        $region21: #{tpu_custom_call.1} parent=19 // pred_check
          %p106 = pneg %p31
        $region22: #{tpu_custom_call.1} parent=19 // pred_check_branch
          %108 = sbr.rel (%p106) target = $region24
        $region23: #{tpu_custom_call.1} parent=19 // pred_region
          %p109 = scmp.lt.s32.totalorder %s11, 1
          %s110 = scalar_select %p109, %s11, 1
          %s111 = smul.addr %s110, 3
          %s112 = smul.addr %s111, 8
          %s113 = scalar_lea.vmem %s0, %s112
        $region24: #{tpu_custom_call.1} parent=19 // pred_fallthru
          _
      $region20: #{tpu_custom_call.1} parent=5 // pred_fallthru
        _
      %p114 = scmp.le.s32.totalorder 1, %s11
      %p115 = scmp.lt.s32.totalorder %s11, 3
      %p116 = pnand %p114, %p115
      %p117 = pneg %p116
      // Predicated region
      $region25: #{tpu_custom_call.1} parent=5 // pred_check
        _
      $region26: #{tpu_custom_call.1} parent=5 // pred_check_branch
        %119 = sbr.rel (%p116) target = $region28
      $region27: #{tpu_custom_call.1} parent=5 // pred_region
        %s120 = ssub.s32 %s11, 1
        %p121 = scmp.lt.s32.totalorder %s16, 1
        %s122 = scalar_select %p121, %s16, 1
        %s123 = smul.addr %s122, 3
        %s124 = smul.addr %s123, 8
        %s125 = scalar_lea.vmem %s0, %s124
        %p126 = pneg %p37
        %p127 = pneg %p34
        %p128 = pneg %p58
        %p129 = pneg %p55
        %p130 = pneg %p84
        %p131 = pneg %p81
        %s132 = sand.u32 %s71, 1
        %s133 = scalar_lea.sflag [#allocation3], %s132
        %s134 = sand.u32 %s71, 1
        %s135 = smul.addr %s134, 8
        %s136 = scalar_lea.vmem [#allocation2], %s135
        %p137 = scmp.lt.s32.totalorder %s16, 1
        %s138 = scalar_select %p137, %s16, 1
        %s139 = smul.addr %s138, 3
        %s140 = smul.addr %s139, 8
        %s141 = scalar_lea.vmem %s0, %s140
        %v143 = vld [vmem:[%s141] sm:$0xff]
        %v144 = vld [vmem:[%s141 + $0x8] sm:$0xff]
        %v145 = vld [vmem:[%s141 + $0x10] sm:$0xff]
        %v146 = vpack.c.bf16 %v143, %v143
        %v147 = vpack.c.bf16 %v144, %v144
        %v148 = vpack.c.bf16 %v145, %v145
        %v149 = vld [vmem:[%s1] sm:$0xff]
        %v150 = vld [vmem:[%s1 + $0x8] sm:$0xff]
        %v151 = vld [vmem:[%s1 + $0x10] sm:$0xff]
        %v152 = vld [vmem:[%s1 + $0x18] sm:$0xff]
        %v153 = vld [vmem:[%s1 + $0x20] sm:$0xff]
        %v154 = vld [vmem:[%s1 + $0x28] sm:$0xff]
        %v155 = vld [vmem:[%s1 + $0x30] sm:$0xff]
        %v156 = vld [vmem:[%s1 + $0x38] sm:$0xff]
        %v157 = vld [vmem:[%s1 + $0x40] sm:$0xff]
        %v158 = vld [vmem:[%s1 + $0x48] sm:$0xff]
        %v159 = vld [vmem:[%s1 + $0x50] sm:$0xff]
        %v160 = vld [vmem:[%s1 + $0x58] sm:$0xff]
        %v161 = vld [vmem:[%s1 + $0x60] sm:$0xff]
        %v162 = vld [vmem:[%s1 + $0x68] sm:$0xff]
        %v163 = vld [vmem:[%s1 + $0x70] sm:$0xff]
        %v164 = vld [vmem:[%s1 + $0x78] sm:$0xff]
        %v165 = vld [vmem:[%s1 + $0x80] sm:$0xff]
        %v166 = vld [vmem:[%s1 + $0x88] sm:$0xff]
        %v167 = vld [vmem:[%s1 + $0x90] sm:$0xff]
        %v168 = vld [vmem:[%s1 + $0x98] sm:$0xff]
        %v169 = vld [vmem:[%s1 + $0xa0] sm:$0xff]
        %v170 = vld [vmem:[%s1 + $0xa8] sm:$0xff]
        %v171 = vld [vmem:[%s1 + $0xb0] sm:$0xff]
        %v172 = vld [vmem:[%s1 + $0xb8] sm:$0xff]
        %v173 = vld [vmem:[%s1 + $0xc0] sm:$0xff]
        %v174 = vld [vmem:[%s1 + $0xc8] sm:$0xff]
        %v175 = vld [vmem:[%s1 + $0xd0] sm:$0xff]
        %v176 = vld [vmem:[%s1 + $0xd8] sm:$0xff]
        %v177 = vld [vmem:[%s1 + $0xe0] sm:$0xff]
        %v178 = vld [vmem:[%s1 + $0xe8] sm:$0xff]
        %v179 = vld [vmem:[%s1 + $0xf0] sm:$0xff]
        %v180 = vld [vmem:[%s1 + $0xf8] sm:$0xff]
        %v181 = vld [vmem:[%s1 + $0x100] sm:$0xff]
        %v182 = vld [vmem:[%s1 + $0x108] sm:$0xff]
        %v183 = vld [vmem:[%s1 + $0x110] sm:$0xff]
        %v184 = vld [vmem:[%s1 + $0x118] sm:$0xff]
        %v185 = vld [vmem:[%s1 + $0x120] sm:$0xff]
        %v186 = vld [vmem:[%s1 + $0x128] sm:$0xff]
        %v187 = vld [vmem:[%s1 + $0x130] sm:$0xff]
        %v188 = vld [vmem:[%s1 + $0x138] sm:$0xff]
        %v189 = vld [vmem:[%s1 + $0x140] sm:$0xff]
        %v190 = vld [vmem:[%s1 + $0x148] sm:$0xff]
        %v191 = vld [vmem:[%s1 + $0x150] sm:$0xff]
        %v192 = vld [vmem:[%s1 + $0x158] sm:$0xff]
        %v193 = vld [vmem:[%s1 + $0x160] sm:$0xff]
        %v194 = vld [vmem:[%s1 + $0x168] sm:$0xff]
        %v195 = vld [vmem:[%s1 + $0x170] sm:$0xff]
        %v196 = vld [vmem:[%s1 + $0x178] sm:$0xff]
        %v245 = vunpack.c.l.b16 %v149
        %v246 = vunpack.c.h.b16 %v149
        %v247 = vunpack.c.l.b16 %v150
        %v248 = vunpack.c.h.b16 %v150
        %v249 = vunpack.c.l.b16 %v151
        %v250 = vunpack.c.h.b16 %v151
        %v251 = vunpack.c.l.b16 %v152
        %v252 = vunpack.c.h.b16 %v152
        %v253 = vunpack.c.l.b16 %v153
        %v254 = vunpack.c.h.b16 %v153
        %v255 = vunpack.c.l.b16 %v154
        %v256 = vunpack.c.h.b16 %v154
        %v257 = vunpack.c.l.b16 %v155
        %v258 = vunpack.c.h.b16 %v155
        %v259 = vunpack.c.l.b16 %v156
        %v260 = vunpack.c.h.b16 %v156
        %v261 = vunpack.c.l.b16 %v157
        %v262 = vunpack.c.h.b16 %v157
        %v263 = vunpack.c.l.b16 %v158
        %v264 = vunpack.c.h.b16 %v158
        %v265 = vunpack.c.l.b16 %v159
        %v266 = vunpack.c.h.b16 %v159
        %v267 = vunpack.c.l.b16 %v160
        %v268 = vunpack.c.h.b16 %v160
        %v269 = vunpack.c.l.b16 %v161
        %v270 = vunpack.c.h.b16 %v161
        %v271 = vunpack.c.l.b16 %v162
        %v272 = vunpack.c.h.b16 %v162
        %v273 = vunpack.c.l.b16 %v163
        %v274 = vunpack.c.h.b16 %v163
        %v275 = vunpack.c.l.b16 %v164
        %v276 = vunpack.c.h.b16 %v164
        %v277 = vunpack.c.l.b16 %v165
        %v278 = vunpack.c.h.b16 %v165
        %v279 = vunpack.c.l.b16 %v166
        %v280 = vunpack.c.h.b16 %v166
        %v281 = vunpack.c.l.b16 %v167
        %v282 = vunpack.c.h.b16 %v167
        %v283 = vunpack.c.l.b16 %v168
        %v284 = vunpack.c.h.b16 %v168
        %v285 = vunpack.c.l.b16 %v169
        %v286 = vunpack.c.h.b16 %v169
        %v287 = vunpack.c.l.b16 %v170
        %v288 = vunpack.c.h.b16 %v170
        %v289 = vunpack.c.l.b16 %v171
        %v290 = vunpack.c.h.b16 %v171
        %v291 = vunpack.c.l.b16 %v172
        %v292 = vunpack.c.h.b16 %v172
        %v293 = vunpack.c.l.b16 %v173
        %v294 = vunpack.c.h.b16 %v173
        %v295 = vunpack.c.l.b16 %v174
        %v296 = vunpack.c.h.b16 %v174
        %v297 = vunpack.c.l.b16 %v175
        %v298 = vunpack.c.h.b16 %v175
        %v299 = vunpack.c.l.b16 %v176
        %v300 = vunpack.c.h.b16 %v176
        %v301 = vunpack.c.l.b16 %v177
        %v302 = vunpack.c.h.b16 %v177
        %v303 = vunpack.c.l.b16 %v178
        %v304 = vunpack.c.h.b16 %v178
        %v305 = vunpack.c.l.b16 %v179
        %v306 = vunpack.c.h.b16 %v179
        %v307 = vunpack.c.l.b16 %v180
        %v308 = vunpack.c.h.b16 %v180
        %v309 = vunpack.c.l.b16 %v181
        %v310 = vunpack.c.h.b16 %v181
        %v311 = vunpack.c.l.b16 %v182
        %v312 = vunpack.c.h.b16 %v182
        %v313 = vunpack.c.l.b16 %v183
        %v314 = vunpack.c.h.b16 %v183
        %v315 = vunpack.c.l.b16 %v184
        %v316 = vunpack.c.h.b16 %v184
        %v317 = vunpack.c.l.b16 %v185
        %v318 = vunpack.c.h.b16 %v185
        %v319 = vunpack.c.l.b16 %v186
        %v320 = vunpack.c.h.b16 %v186
        %v321 = vunpack.c.l.b16 %v187
        %v322 = vunpack.c.h.b16 %v187
        %v323 = vunpack.c.l.b16 %v188
        %v324 = vunpack.c.h.b16 %v188
        %v325 = vunpack.c.l.b16 %v189
        %v326 = vunpack.c.h.b16 %v189
        %v327 = vunpack.c.l.b16 %v190
        %v328 = vunpack.c.h.b16 %v190
        %v329 = vunpack.c.l.b16 %v191
        %v330 = vunpack.c.h.b16 %v191
        %v331 = vunpack.c.l.b16 %v192
        %v332 = vunpack.c.h.b16 %v192
        %v333 = vunpack.c.l.b16 %v193
        %v334 = vunpack.c.h.b16 %v193
        %v335 = vunpack.c.l.b16 %v194
        %v336 = vunpack.c.h.b16 %v194
        %v337 = vunpack.c.l.b16 %v195
        %v338 = vunpack.c.h.b16 %v195
        %v339 = vunpack.c.l.b16 %v196
        %v340 = vunpack.c.h.b16 %v196
        %v341 = vpack.c.b16 %v247, %v245
        %v342 = vpack.c.b16 %v248, %v246
        %v343 = vpack.c.b16 %v251, %v249
        %v344 = vpack.c.b16 %v252, %v250
        %v345 = vpack.c.b16 %v255, %v253
        %v346 = vpack.c.b16 %v256, %v254
        %v347 = vpack.c.b16 %v259, %v257
        %v348 = vpack.c.b16 %v260, %v258
        %v349 = vpack.c.b16 %v263, %v261
        %v350 = vpack.c.b16 %v264, %v262
        %v351 = vpack.c.b16 %v267, %v265
        %v352 = vpack.c.b16 %v268, %v266
        %v353 = vpack.c.b16 %v271, %v269
        %v354 = vpack.c.b16 %v272, %v270
        %v355 = vpack.c.b16 %v275, %v273
        %v356 = vpack.c.b16 %v276, %v274
        %v357 = vpack.c.b16 %v279, %v277
        %v358 = vpack.c.b16 %v280, %v278
        %v359 = vpack.c.b16 %v283, %v281
        %v360 = vpack.c.b16 %v284, %v282
        %v361 = vpack.c.b16 %v287, %v285
        %v362 = vpack.c.b16 %v288, %v286
        %v363 = vpack.c.b16 %v291, %v289
        %v364 = vpack.c.b16 %v292, %v290
        %v365 = vpack.c.b16 %v295, %v293
        %v366 = vpack.c.b16 %v296, %v294
        %v367 = vpack.c.b16 %v299, %v297
        %v368 = vpack.c.b16 %v300, %v298
        %v369 = vpack.c.b16 %v303, %v301
        %v370 = vpack.c.b16 %v304, %v302
        %v371 = vpack.c.b16 %v307, %v305
        %v372 = vpack.c.b16 %v308, %v306
        %v373 = vpack.c.b16 %v311, %v309
        %v374 = vpack.c.b16 %v312, %v310
        %v375 = vpack.c.b16 %v315, %v313
        %v376 = vpack.c.b16 %v316, %v314
        %v377 = vpack.c.b16 %v319, %v317
        %v378 = vpack.c.b16 %v320, %v318
        %v379 = vpack.c.b16 %v323, %v321
        %v380 = vpack.c.b16 %v324, %v322
        %v381 = vpack.c.b16 %v327, %v325
        %v382 = vpack.c.b16 %v328, %v326
        %v383 = vpack.c.b16 %v331, %v329
        %v384 = vpack.c.b16 %v332, %v330
        %v385 = vpack.c.b16 %v335, %v333
        %v386 = vpack.c.b16 %v336, %v334
        %v387 = vpack.c.b16 %v339, %v337
        %v388 = vpack.c.b16 %v340, %v338
        %437 = vmatprep.subr.bf16.mxu0 %v342
        %438 = vmatpush1.bf16.msra.mxu0 %v341
        %439 = vmatprep.subr.bf16.mxu0 %v344
        %440 = vmatpush1.bf16.msra.mxu0 %v343
        %441 = vmatprep.subr.bf16.mxu0 %v346
        %442 = vmatpush1.bf16.msra.mxu0 %v345
        %443 = vmatprep.subr.bf16.mxu0 %v348
        %444 = vmatpush1.bf16.msra.mxu0 %v347
        %445 = vmatprep.subr.bf16.mxu0 %v350
        %446 = vmatpush1.bf16.msra.mxu0 %v349
        %447 = vmatprep.subr.bf16.mxu0 %v352
        %448 = vmatpush1.bf16.msra.mxu0 %v351
        %449 = vmatprep.subr.bf16.mxu0 %v354
        %450 = vmatpush1.bf16.msra.mxu0 %v353
        %451 = vmatprep.subr.bf16.mxu0 %v356
        %452 = vmatpush1.bf16.msra.mxu0 %v355
        %453 = vmatprep.subr.bf16.mxu0 %v358
        %454 = vmatpush1.bf16.msra.mxu0 %v357
        %455 = vmatprep.subr.bf16.mxu0 %v360
        %456 = vmatpush1.bf16.msra.mxu0 %v359
        %457 = vmatprep.subr.bf16.mxu0 %v362
        %458 = vmatpush1.bf16.msra.mxu0 %v361
        %459 = vmatprep.subr.bf16.mxu0 %v364
        %460 = vmatpush1.bf16.msra.mxu0 %v363
        %461 = vmatprep.subr.bf16.mxu0 %v366
        %462 = vmatpush1.bf16.msra.mxu0 %v365
        %463 = vmatprep.subr.bf16.mxu0 %v368
        %464 = vmatpush1.bf16.msra.mxu0 %v367
        %465 = vmatprep.subr.bf16.mxu0 %v370
        %466 = vmatpush1.bf16.msra.mxu0 %v369
        %467 = vmatprep.subr.bf16.mxu0 %v372
        %468 = vmatpush1.bf16.msra.mxu0 %v371
        %469 = vmatprep.mubr.bf16.mxu0 %v147
        %470 = vmatmul.mubr.bf16.gmra.mrb[0].mxu0 %v146
        %v471 = vpop.f32.mrb[0].mxu0
        %v472 = vadd.f32 0.0, %v471
        %v473 = vpop.f32.mrb[0].mxu0
        %v474 = vadd.f32 0.0, %v473
        %v475 = vpop.f32.mrb[0].mxu0
        %v476 = vpop.f32.mrb[0].mxu0
        %477 = vdwg.mxu0
        %478 = vmatprep.subr.bf16.mxu0 %v374
        %479 = vmatpush1.bf16.msra.mxu0 %v373
        %480 = vmatprep.subr.bf16.mxu0 %v376
        %481 = vmatpush1.bf16.msra.mxu0 %v375
        %482 = vmatprep.subr.bf16.mxu0 %v378
        %483 = vmatpush1.bf16.msra.mxu0 %v377
        %484 = vmatprep.subr.bf16.mxu0 %v380
        %485 = vmatpush1.bf16.msra.mxu0 %v379
        %486 = vmatprep.subr.bf16.mxu0 %v382
        %487 = vmatpush1.bf16.msra.mxu0 %v381
        %488 = vmatprep.subr.bf16.mxu0 %v384
        %489 = vmatpush1.bf16.msra.mxu0 %v383
        %490 = vmatprep.subr.bf16.mxu0 %v386
        %491 = vmatpush1.bf16.msra.mxu0 %v385
        %492 = vmatprep.subr.bf16.mxu0 %v388
        %493 = vmatpush1.bf16.msra.mxu0 %v387
        %494 = vmatprep.subr.bf16.mxu0 0
        %495 = vmatpush1.bf16.msra.mxu0 0
        %496 = vmatprep.subr.bf16.mxu0 0
        %497 = vmatpush1.bf16.msra.mxu0 0
        %498 = vmatprep.subr.bf16.mxu0 0
        %499 = vmatpush1.bf16.msra.mxu0 0
        %500 = vmatprep.subr.bf16.mxu0 0
        %501 = vmatpush1.bf16.msra.mxu0 0
        %502 = vmatprep.subr.bf16.mxu0 0
        %503 = vmatpush1.bf16.msra.mxu0 0
        %504 = vmatprep.subr.bf16.mxu0 0
        %505 = vmatpush1.bf16.msra.mxu0 0
        %506 = vmatprep.subr.bf16.mxu0 0
        %507 = vmatpush1.bf16.msra.mxu0 0
        %508 = vmatprep.subr.bf16.mxu0 0
        %509 = vmatpush1.bf16.msra.mxu0 0
        %510 = vmatprep.mubr.bf16.mxu0 0
        %511 = vmatmul.mubr.bf16.gmra.mrb[0].mxu0 %v148
        %v512 = vpop.f32.mrb[0].mxu0
        %v513 = vadd.f32 %v472, %v512
        %v514 = vpop.f32.mrb[0].mxu0
        %v515 = vadd.f32 %v474, %v514
        %v516 = vpop.f32.mrb[0].mxu0
        %v517 = vpop.f32.mrb[0].mxu0
        %518 = vdwg.mxu0
        %v519 = vpack.c.bf16 %v513, %v513
        %v520 = vpack.c.bf16 %v515, %v515
        %522 = vrot.lane.b32.xlu0 %v519, 64
        %v523 = vpop.permute.xlu0 %522
        %vm524 = vcmask 523264
        %v526 = vsel %vm524, %v519, 0
        %v529 = vsel %vm524, %v523, 0
        %531 = vmatprep.subr.bf16.mxu0 0
        %532 = vmatpush1.bf16.xpose.msra.mxu0 %v529
        %533 = vmatprep.subr.bf16.mxu0 0
        %534 = vmatpush1.bf16.xpose.msra.mxu0 0
        %535 = vmatprep.subr.bf16.mxu0 0
        %536 = vmatpush1.bf16.xpose.msra.mxu0 0
        %537 = vmatprep.subr.bf16.mxu0 0
        %538 = vmatpush1.bf16.xpose.msra.mxu0 0
        %539 = vmatprep.subr.bf16.mxu0 0
        %540 = vmatpush1.bf16.xpose.msra.mxu0 0
        %541 = vmatprep.subr.bf16.mxu0 0
        %542 = vmatpush1.bf16.xpose.msra.mxu0 0
        %543 = vmatprep.subr.bf16.mxu0 0
        %544 = vmatpush1.bf16.xpose.msra.mxu0 0
        %545 = vmatprep.subr.bf16.mxu0 0
        %546 = vmatpush1.bf16.xpose.msra.mxu0 0
        %547 = vmatprep.subr.bf16.mxu0 0
        %548 = vmatpush1.bf16.xpose.msra.mxu0 0
        %549 = vmatprep.subr.bf16.mxu0 0
        %550 = vmatpush1.bf16.xpose.msra.mxu0 0
        %551 = vmatprep.subr.bf16.mxu0 0
        %552 = vmatpush1.bf16.xpose.msra.mxu0 0
        %553 = vmatprep.subr.bf16.mxu0 0
        %554 = vmatpush1.bf16.xpose.msra.mxu0 0
        %555 = vmatprep.subr.bf16.mxu0 0
        %556 = vmatpush1.bf16.xpose.msra.mxu0 0
        %557 = vmatprep.subr.bf16.mxu0 0
        %558 = vmatpush1.bf16.xpose.msra.mxu0 0
        %559 = vmatprep.subr.bf16.mxu0 0
        %560 = vmatpush1.bf16.xpose.msra.mxu0 0
        %561 = vmatprep.subr.bf16.mxu0 0
        %562 = vmatpush1.bf16.xpose.msra.mxu0 0
        %563 = vmatprep.mubr.bf16.mxu0 0
        %564 = vmatmul.mubr.bf16.gmra.mrb[0].mxu0 %v526
        %v565 = vpop.f32.mrb[0].mxu0
        %v566 = vadd.f32 0.0, %v565
        %v567 = vpop.f32.mrb[0].mxu0
        %v568 = vpop.f32.mrb[0].mxu0
        %v569 = vpop.f32.mrb[0].mxu0
        %570 = vdwg.mxu0
        %v571 = vlaneseq
        %v572 = vshrl.u32 %v571, 7
        %v573 = vlaneseq
        %v574 = vand.u32 %v573, 127
        %vm575 = vcmp.le.s32.totalorder %v574, %v572
        %v576 = vsel %vm575, %v566, -inf
        %vm577 = vcmask 64512
        %v578 = vsel %vm577, %v576, -inf
        %579 = vmax.xlane.f32.xlu0 %v578
        %v580 = vpop.xlane.xlu0 %579
        %v581 = vsub.f32 %v576, %v580
        %v582 = vmul.f32 %v581, 1.442695
        %v583 = vpow.pop %v582
        %v584 = vsel %vm577, %v583, 0.0
        %585 = vadd.xlane.f32.xlu0 %v584
        %v586 = vpop.xlane.xlu0 %585
        %v587 = vpack.c.bf16 %v583, %v583
        %v589 = vsel %vm577, %v587, 0
        %vm591 = vcmask 1043456
        %v593 = vsel %vm591, %v520, 0
        %595 = vmatprep.subr.bf16.mxu0 0
        %596 = vmatpush1.bf16.msra.mxu0 %v593
        %597 = vmatprep.subr.bf16.mxu0 0
        %598 = vmatpush1.bf16.msra.mxu0 0
        %599 = vmatprep.subr.bf16.mxu0 0
        %600 = vmatpush1.bf16.msra.mxu0 0
        %601 = vmatprep.subr.bf16.mxu0 0
        %602 = vmatpush1.bf16.msra.mxu0 0
        %603 = vmatprep.subr.bf16.mxu0 0
        %604 = vmatpush1.bf16.msra.mxu0 0
        %605 = vmatprep.subr.bf16.mxu0 0
        %606 = vmatpush1.bf16.msra.mxu0 0
        %607 = vmatprep.subr.bf16.mxu0 0
        %608 = vmatpush1.bf16.msra.mxu0 0
        %609 = vmatprep.subr.bf16.mxu0 0
        %610 = vmatpush1.bf16.msra.mxu0 0
        %611 = vmatprep.subr.bf16.mxu0 0
        %612 = vmatpush1.bf16.msra.mxu0 0
        %613 = vmatprep.subr.bf16.mxu0 0
        %614 = vmatpush1.bf16.msra.mxu0 0
        %615 = vmatprep.subr.bf16.mxu0 0
        %616 = vmatpush1.bf16.msra.mxu0 0
        %617 = vmatprep.subr.bf16.mxu0 0
        %618 = vmatpush1.bf16.msra.mxu0 0
        %619 = vmatprep.subr.bf16.mxu0 0
        %620 = vmatpush1.bf16.msra.mxu0 0
        %621 = vmatprep.subr.bf16.mxu0 0
        %622 = vmatpush1.bf16.msra.mxu0 0
        %623 = vmatprep.subr.bf16.mxu0 0
        %624 = vmatpush1.bf16.msra.mxu0 0
        %625 = vmatprep.subr.bf16.mxu0 0
        %626 = vmatpush1.bf16.msra.mxu0 0
        %627 = vmatprep.mubr.bf16.mxu0 0
        %628 = vmatmul.mubr.bf16.gmra.mrb[0].mxu0 %v589
        %v629 = vpop.f32.mrb[0].mxu0
        %v630 = vadd.f32 0.0, %v629
        %v631 = vpop.f32.mrb[0].mxu0
        %v632 = vpop.f32.mrb[0].mxu0
        %v633 = vpop.f32.mrb[0].mxu0
        %634 = vdwg.mxu0
        %v635 = vrcp.pop %v586
        %v636 = vmul.f32 %v630, %v635
        %637 = vst.msk [vmem:[%s136] sm:$0xff] %vm524, %v636
        %s638 = sand.u32 %s71, 1
        %s639 = scalar_lea.sflag [#allocation3], %s638
        %s640 = sand.u32 %s71, 1
        %s641 = smul.addr %s640, 8
        %s642 = scalar_lea.vmem [#allocation2], %s641
        // Predicated region
        $region29: #{tpu_custom_call.1} parent=27 // pred_check
          %p643 = pneg %p81
        $region30: #{tpu_custom_call.1} parent=27 // pred_check_branch
          %645 = sbr.rel (%p643) target = $region32
        $region31: #{tpu_custom_call.1} parent=27 // pred_region
          %s647 = ssub.s32 128, 128
          %648 = vsyncadd %s639, %s647
          %s649 = smul.addr %s16, 128
          %s650 = scalar_lea.hbm %s2, %s649
          %s652 = sshll.u32 %s642, 4
          %s653 = int_to_ptr.vmem [resolvable:$true] %s652
          %655 = dma.vmem_to_hbm [thread:$0]  %s653, 128, %s650, %s639
        $region32: #{tpu_custom_call.1} parent=27 // pred_fallthru
          _
      $region28: #{tpu_custom_call.1} parent=5 // pred_fallthru
        _
      %p656 = scmp.le.s32.totalorder 2, %s11
      // Predicated region
      $region33: #{tpu_custom_call.1} parent=5 // pred_check
        %p657 = pneg %p656
      $region34: #{tpu_custom_call.1} parent=5 // pred_check_branch
        %659 = sbr.rel (%p657) target = $region36
      $region35: #{tpu_custom_call.1} parent=5 // pred_region
        %s660 = ssub.s32 %s11, 2
        // Predicated region
        $region37: #{tpu_custom_call.1} parent=35 // pred_check
          %p661 = pneg %p87
        $region38: #{tpu_custom_call.1} parent=35 // pred_check_branch
          %663 = sbr.rel (%p661) target = $region40
        $region39: #{tpu_custom_call.1} parent=35 // pred_region
          %s664 = sand.u32 %s72, 1
          %s665 = scalar_lea.sflag [#allocation3], %s664
          %s666 = sand.u32 %s72, 1
          %s667 = smul.addr %s666, 8
          %s668 = scalar_lea.vmem [#allocation2], %s667
          %669 = dma.done %s665, 128
        $region40: #{tpu_custom_call.1} parent=35 // pred_fallthru
          _
      $region36: #{tpu_custom_call.1} parent=5 // pred_fallthru
        _
    $region6: #{tpu_custom_call.1} parent=1 // loop_footer
      %s15 = sadd.s32 1, %s11
    $region7: #{tpu_custom_call.1} parent=1 // loop_footer_branch
      %10 = sbr.rel target = $region3
    $region8: #{tpu_custom_call.1} parent=1 // loop_exit
      _
    %670 = vsyncpa [#allocation3], 1
    %s671 = scalar_lea.sflag [#allocation3], 1
    %672 = vsyncpa %s671, 1

</llo_original>
